<compile_context>
chip_gen: v6e
topology: v6e:2x2x1
jax: 0.10.0
libtpu: 0.0.40
codegen_flags: <defaults>
</compile_context>

<pallas_src>
import jax
import jax.numpy as jnp
from jax.experimental import pallas as pl
from jax.experimental.pallas import tpu as pltpu


def _patch_embed_kernel(patches_ref, w_ref, cls_ref, pos_ref, out_ref):
    # patches_ref: (TB, N, K)    bf16  patches for TB batch elements
    # w_ref:       (K, D)        bf16  projection weight (already transposed)
    # cls_ref:     (1, D)        f32   cls_token + position_embedding[:, 0]
    # pos_ref:     (N, D)        f32   position_embedding[:, 1:] + bias (pre-folded)
    # out_ref:     (TB, N+1, D)  f32   final embeddings for TB batch elements
    TB, N, K = patches_ref.shape
    D = w_ref.shape[1]

    # Flatten the batch tile into the M dimension -> one big MXU matmul, f32 accum.
    p = patches_ref[...].reshape(TB * N, K)
    y = jnp.dot(p, w_ref[...], preferred_element_type=jnp.float32)     # (TB*N, D)
    y = y.reshape(TB, N, D) + pos_ref[...]                              # bias folded in

    out_ref[:, 1:, :] = y.astype(out_ref.dtype)
    out_ref[:, 0:1, :] = jnp.broadcast_to(cls_ref[...], (TB, 1, D)).astype(out_ref.dtype)


def _pick_batch_tile(B, N, max_rows=512):
    """Largest divisor TB of B with TB * N <= max_rows (at least 1)."""
    tb = 1
    for cand in range(1, B + 1):
        if B % cand == 0 and cand * N <= max_rows:
            tb = cand
    return tb


def patch_embedding_forward(x, w, b, cls_token, position_embedding, patch_size,
                            batch_tile=None):
    """x: (B, C, H, W) float32. Returns (B, num_patches + 1, d_model) float32."""
    B, C, H, W = x.shape
    P = patch_size
    nH, nW = H // P, W // P
    N = nH * nW
    K = C * P * P
    D = w.shape[0]                     # torch nn.Linear layout: w is (d_model, K)

    TB = batch_tile if batch_tile is not None else _pick_batch_tile(B, N)
    assert B % TB == 0, "batch_tile must divide the batch size"

    # ---- patch extraction (matches torch unfold/view/permute/flatten exactly) ----
    # (B, C, nH, P, nW, P) -> (B, nH, nW, C, P, P) -> (B, N, C*P*P)
    patches = x.reshape(B, C, nH, P, nW, P)
    patches = jnp.transpose(patches, (0, 2, 4, 1, 3, 5)).reshape(B, N, K)

    # bf16 MXU operands (f32 accumulation happens inside the kernel).
    patches_bf16 = patches.astype(jnp.bfloat16)
    w_t_bf16 = jnp.transpose(w).astype(jnp.bfloat16)                    # (K, D)

    # f32 epilogue terms: bias folded into the patch-token position rows once;
    # cls row = cls_token + position row 0.
    pos_bias = (position_embedding[0, 1:, :] + b[None, :]).astype(jnp.float32)        # (N, D)
    cls_row = (cls_token[0, 0, :] + position_embedding[0, 0, :]).reshape(1, D).astype(jnp.float32)

    out = pl.pallas_call(
        _patch_embed_kernel,
        out_shape=jax.ShapeDtypeStruct((B, N + 1, D), jnp.float32),
        grid_spec=pltpu.PrefetchScalarGridSpec(
            num_scalar_prefetch=0,
            grid=(B // TB,),
            in_specs=[
                pl.BlockSpec((TB, N, K), lambda i: (i, 0, 0)),   # patch tile per step
                pl.BlockSpec((K, D), lambda i: (0, 0)),          # weight: resident
                pl.BlockSpec((1, D), lambda i: (0, 0)),          # cls row: resident
                pl.BlockSpec((N, D), lambda i: (0, 0)),          # pos+bias: resident
            ],
            out_specs=pl.BlockSpec((TB, N + 1, D), lambda i: (i, 0, 0)),
        ),
        compiler_params=pltpu.CompilerParams(
            dimension_semantics=("parallel",),
            vmem_limit_bytes=32 * 1024 * 1024,
        ),
    )(patches_bf16, w_t_bf16, cls_row, pos_bias)

    return out.astype(x.dtype)


def _reference_forward(x, w, b, cls_token, position_embedding, patch_size):
    """Pure-JAX f32 reference matching the PyTorch module semantics."""
    B, C, H, W = x.shape
    P = patch_size
    nH, nW = H // P, W // P
    N = nH * nW
    K = C * P * P
    patches = x.reshape(B, C, nH, P, nW, P)
    patches = jnp.transpose(patches, (0, 2, 4, 1, 3, 5)).reshape(B, N, K)
    pe = patches @ w.T + b                                      # (B, N, D)
    cls = jnp.broadcast_to(cls_token, (B, 1, w.shape[0]))
    emb = jnp.concatenate([cls, pe], axis=1) + position_embedding
    return emb


if __name__ == "__main__":
    # ViT-style config with lane-dense d_model and sublane-aligned patch count:
    # img 32x32, 4x4 patches, 4 channels, d_model 128 -> N = 64, K = 64.
    img_size, patch_size, in_channels, d_model = 32, 4, 4, 128
    batch = 4
    num_patches = (img_size // patch_size) ** 2
    patch_dim = patch_size * patch_size * in_channels

    key = jax.random.PRNGKey(0)
    kx, kw, kb, kc, kp = jax.random.split(key, 5)

    x = jax.random.normal(kx, (batch, in_channels, img_size, img_size), jnp.float32)
    # nn.Linear(patch_dim, d_model): weight (d_model, patch_dim), bias (d_model,)
    w = jax.random.normal(kw, (d_model, patch_dim), jnp.float32) * 0.02
    b = jax.random.normal(kb, (d_model,), jnp.float32) * 0.02
    cls_token = jax.random.normal(kc, (1, 1, d_model), jnp.float32)
    position_embedding = jax.random.normal(kp, (1, num_patches + 1, d_model), jnp.float32)

    # batch_tile=2 -> grid of 2 "parallel" steps, M = TB*N = 128 rows per MXU call.
    out = patch_embedding_forward(x, w, b, cls_token, position_embedding, patch_size,
                                  batch_tile=2)
    out = jax.block_until_ready(out)

    ref = _reference_forward(x, w, b, cls_token, position_embedding, patch_size)
    assert out.shape == (batch, num_patches + 1, d_model), out.shape
    # bf16 MXU operands with f32 accumulation -> relaxed tolerance vs the f32 reference.
    max_err = float(jnp.max(jnp.abs(out - ref)))
    assert jnp.allclose(out, ref, atol=2e-2, rtol=2e-2), f"mismatch vs reference, max_err={max_err}"

    print("KERNEL_OK")
</pallas_src>

<mosaic_0001>
module attributes {stable_mosaic.version = 11 : i64} {
  func.func @_patch_embed_kernel(%arg0: i32, %arg1: memref<2x64x64xbf16, #tpu.memory_space<vmem>>, %arg2: memref<64x128xbf16, #tpu.memory_space<vmem>>, %arg3: memref<1x128xf32, #tpu.memory_space<vmem>>, %arg4: memref<64x128xf32, #tpu.memory_space<vmem>>, %arg5: memref<2x65x128xf32, #tpu.memory_space<vmem>>) attributes {dimension_semantics = [#tpu.dimension_semantics<parallel>], iteration_bounds = array<i64: 2>, scalar_prefetch = 0 : i64, scratch_operands = 0 : i64, tpu.core_type = #tpu.core_type<tc>, window_params = [{transform_indices = @transform_0, window_bounds = array<i64: 2, 64, 64>}, {pipeline_mode = #tpu.pipeline_mode<synchronous>, transform_indices = @transform_1, window_bounds = array<i64: 64, 128>}, {pipeline_mode = #tpu.pipeline_mode<synchronous>, transform_indices = @transform_2, window_bounds = array<i64: 1, 128>}, {pipeline_mode = #tpu.pipeline_mode<synchronous>, transform_indices = @transform_3, window_bounds = array<i64: 64, 128>}, {transform_indices = @transform_4, window_bounds = array<i64: 2, 65, 128>}]} {
    %c0 = arith.constant 0 : index
    %c0_0 = arith.constant 0 : index
    %c0_1 = arith.constant 0 : index
    %0 = vector.load %arg1[%c0, %c0_0, %c0_1] : memref<2x64x64xbf16, #tpu.memory_space<vmem>>, vector<2x64x64xbf16>
    %1 = vector.shape_cast %0 : vector<2x64x64xbf16> to vector<128x64xbf16>
    %c0_2 = arith.constant 0 : index
    %c0_3 = arith.constant 0 : index
    %2 = vector.load %arg2[%c0_2, %c0_3] : memref<64x128xbf16, #tpu.memory_space<vmem>>, vector<64x128xbf16>
    %cst = arith.constant dense<0.000000e+00> : vector<128x128xf32>
    %3 = tpu.matmul %1, %2, %cst {dimension_numbers = #tpu.dot_dimension_numbers<[1], [0], [0], [1], [0, 0, 1, 1], [], []>} : vector<128x64xbf16>, vector<64x128xbf16>, vector<128x128xf32> -> vector<128x128xf32>
    %4 = vector.shape_cast %3 : vector<128x128xf32> to vector<2x64x128xf32>
    %c0_4 = arith.constant 0 : index
    %c0_5 = arith.constant 0 : index
    %5 = vector.load %arg4[%c0_4, %c0_5] : memref<64x128xf32, #tpu.memory_space<vmem>>, vector<64x128xf32>
    %6 = vector.shape_cast %5 : vector<64x128xf32> to vector<1x64x128xf32>
    %7 = vector.broadcast %6 : vector<1x64x128xf32> to vector<2x64x128xf32>
    %8 = arith.addf %4, %7 : vector<2x64x128xf32>
    %c0_6 = arith.constant 0 : index
    %c1 = arith.constant 1 : index
    %c0_7 = arith.constant 0 : index
    %9 = vector.load %arg5[%c0_6, %c1, %c0_7] : memref<2x65x128xf32, #tpu.memory_space<vmem>>, vector<2x64x128xf32>
    tpu.vector_store %arg5[%c0_6, %c1, %c0_7], %8 {strides = array<i32>} : memref<2x65x128xf32, #tpu.memory_space<vmem>>, vector<2x64x128xf32>,
    %c0_8 = arith.constant 0 : index
    %c0_9 = arith.constant 0 : index
    %10 = vector.load %arg3[%c0_8, %c0_9] : memref<1x128xf32, #tpu.memory_space<vmem>>, vector<1x128xf32>
    %11 = vector.shape_cast %10 : vector<1x128xf32> to vector<1x1x128xf32>
    %12 = vector.broadcast %11 : vector<1x1x128xf32> to vector<2x1x128xf32>
    %c0_10 = arith.constant 0 : index
    %c0_11 = arith.constant 0 : index
    %c0_12 = arith.constant 0 : index
    %13 = vector.load %arg5[%c0_10, %c0_11, %c0_12] : memref<2x65x128xf32, #tpu.memory_space<vmem>>, vector<2x1x128xf32>
    tpu.vector_store %arg5[%c0_10, %c0_11, %c0_12], %12 {strides = array<i32>} : memref<2x65x128xf32, #tpu.memory_space<vmem>>, vector<2x1x128xf32>,
    return
  }
  func.func @transform_0(%arg0: i32) -> (i32, i32, i32) {
    %c0_i32 = arith.constant 0 : i32
    %c0_i32_0 = arith.constant 0 : i32
    %c0_i32_1 = arith.constant 0 : i32
    return %arg0, %c0_i32, %c0_i32_0 : i32, i32, i32
  }
  func.func @transform_1(%arg0: i32) -> (i32, i32) {
    %c0_i32 = arith.constant 0 : i32
    %c0_i32_0 = arith.constant 0 : i32
    %c0_i32_1 = arith.constant 0 : i32
    return %c0_i32, %c0_i32_0 : i32, i32
  }
  func.func @transform_2(%arg0: i32) -> (i32, i32) {
    %c0_i32 = arith.constant 0 : i32
    %c0_i32_0 = arith.constant 0 : i32
    %c0_i32_1 = arith.constant 0 : i32
    return %c0_i32, %c0_i32_0 : i32, i32
  }
  func.func @transform_3(%arg0: i32) -> (i32, i32) {
    %c0_i32 = arith.constant 0 : i32
    %c0_i32_0 = arith.constant 0 : i32
    %c0_i32_1 = arith.constant 0 : i32
    return %c0_i32, %c0_i32_0 : i32, i32
  }
  func.func @transform_4(%arg0: i32) -> (i32, i32, i32) {
    %c0_i32 = arith.constant 0 : i32
    %c0_i32_0 = arith.constant 0 : i32
    %c0_i32_1 = arith.constant 0 : i32
    return %arg0, %c0_i32, %c0_i32_0 : i32, i32, i32
  }
}

</mosaic_0001>

<llo_original>
// kernel: tpu_custom_call.1
$region0: #{tpu_custom_call.1}
  #allocation0 [shape = 'u32[]', space=smem, size = 0x4, offset = 0x4, fixed_abs, tag = 'smem constant byte address 0x4 - core index']
  #allocation1 [shape = 'u32[144,128]{1,0:T(1,128)}', space=vmem, size = 0x12000, scoped, tag = 'internal scratch']
  %s0 = inlined_call_operand.hbm [shape: bf16[4,64,64], index: 0, kind: input, shape index: {}]
  %s1 = inlined_call_operand.hbm [shape: bf16[64,128], index: 1, kind: input, shape index: {}]
  %s2 = inlined_call_operand.vmem [shape: f32[1,128], index: 2, kind: input, shape index: {}]
  %s3 = inlined_call_operand.hbm [shape: f32[64,128], index: 3, kind: input, shape index: {}]
  %s4 = inlined_call_operand.vmem [shape: f32[4,65,128], index: 4, kind: output, shape index: {}]
  %s5 = sld [smem:[#allocation0]]
  $region61: #{tpu_custom_call.1} parent=0
    _
  %s7 = ssub.s32 1, %s5
  %s8 = scalar_select 0, %s7, %s5
  $region1: #{tpu_custom_call.1} parent=0
    #allocation2 [shape = 'u8[65536]{0}', space=vmem, size = 0x10000, scoped, tag = 'input window, operand 0']
    #allocation3 [shape = 's32[2]{0}', space=sflag, size = 0x8, scoped, tag = 'scoped memory for tpu_custom_call.1']
    #allocation4 [shape = 'u8[16384]{0}', space=vmem, size = 0x4000, scoped, tag = 'input window, operand 1, single buffered']
    #allocation5 [shape = 's32[1]{0}', space=sflag, size = 0x4, scoped, tag = 'scoped memory for tpu_custom_call.1']
    #allocation6 [shape = 'u8[32768]{0}', space=vmem, size = 0x8000, scoped, tag = 'input window, operand 3, single buffered']
    %9 = vsyncpa [#allocation3], 0
    %s10 = scalar_lea.sflag [#allocation3], 1
    %11 = vsyncpa %s10, 0
    %12 = vsyncpa [#allocation5], 0
    loop: start=0, step=1, limit=4
    $region2: #{tpu_custom_call.1} parent=1 // loop_pre_header
      _
    $region3: #{tpu_custom_call.1} parent=1 // loop_header
      %s14 = sphi 0, %s18
      %p15 = scmp.ge.s32.totalorder %s14, 4
      %s24 = sphi 0, %s26
      %s27 = sphi 0, %s24
      %s28 = sphi 0, %s27
      %s44 = sphi 0, %s28
      %s48 = sphi 0, %s48
      %s50 = sphi 0, %s48
      %s51 = sphi 0, %s50
      %s65 = sphi 0, %s51
      %s69 = sphi 0, %s69
      %s71 = sphi 0, %s69
      %s72 = sphi 0, %s71
      %s86 = sphi 0, %s72
      %s90 = sphi 0, %s90
      %s92 = sphi 0, %s90
      %s93 = sphi 0, %s92
      %s107 = sphi 0, %s93
      %s113 = sphi 0, %s115
      %s116 = sphi 0, %s113
      %s117 = sphi 0, %s116
      %s133 = sphi 0, %s117
    $region4: #{tpu_custom_call.1} parent=1 // loop_header_branch
      %17 = sbr.rel (%p15) target = $region8
    $region5: #{tpu_custom_call.1} parent=1 // loop_body
      %s19 = ssub.s32 %s14, 1
      %s20 = ssub.s32 %s14, 2
      %s21 = sadd.s32 %s14, 1
      %s22 = ssub.s32 %s14, %s21
      %p23 = scmp.eq.s32.totalorder %s22, 0
      %s25 = sadd.s32 %s24, 1
      %s26 = scalar_select %p23, %s24, %s25
      %p29 = pneg %p23
      %p30 = scmp.eq.s32.totalorder %s14, 1
      %p31 = por %p29, %p30
      %p32 = scmp.ne.s32.totalorder %s24, %s27
      %p33 = scmp.eq.s32.totalorder %s14, 0
      %p34 = por %p32, %p33
      %p35 = scmp.ne.s32.totalorder %s24, %s27
      %p36 = scmp.eq.s32.totalorder %s19, 1
      %p37 = por %p35, %p36
      %p38 = scmp.ne.s32.totalorder %s27, %s28
      %p39 = scmp.eq.s32.totalorder %s19, 0
      %p40 = por %p38, %p39
      %p41 = scmp.ne.s32.totalorder %s27, %s28
      %p42 = scmp.eq.s32.totalorder %s20, 1
      %p43 = por %p41, %p42
      %p45 = scmp.ne.s32.totalorder %s28, %s44
      %p46 = scmp.eq.s32.totalorder %s20, 0
      %p47 = por %p45, %p46
      %s49 = sadd.s32 %s48, 1
      %p52 = scmp.eq.s32.totalorder %s14, 1
      %p53 = scmp.ne.s32.totalorder %s48, %s50
      %p54 = scmp.eq.s32.totalorder %s14, 0
      %p55 = por %p53, %p54
      %p56 = scmp.ne.s32.totalorder %s48, %s50
      %p57 = scmp.eq.s32.totalorder %s19, 1
      %p58 = por %p56, %p57
      %p59 = scmp.ne.s32.totalorder %s50, %s51
      %p60 = scmp.eq.s32.totalorder %s19, 0
      %p61 = por %p59, %p60
      %p62 = scmp.ne.s32.totalorder %s50, %s51
      %p63 = scmp.eq.s32.totalorder %s20, 1
      %p64 = por %p62, %p63
      %p66 = scmp.ne.s32.totalorder %s51, %s65
      %p67 = scmp.eq.s32.totalorder %s20, 0
      %p68 = por %p66, %p67
      %s70 = sadd.s32 %s69, 1
      %p73 = scmp.eq.s32.totalorder %s14, 1
      %p74 = scmp.ne.s32.totalorder %s69, %s71
      %p75 = scmp.eq.s32.totalorder %s14, 0
      %p76 = por %p74, %p75
      %p77 = scmp.ne.s32.totalorder %s69, %s71
      %p78 = scmp.eq.s32.totalorder %s19, 1
      %p79 = por %p77, %p78
      %p80 = scmp.ne.s32.totalorder %s71, %s72
      %p81 = scmp.eq.s32.totalorder %s19, 0
      %p82 = por %p80, %p81
      %p83 = scmp.ne.s32.totalorder %s71, %s72
      %p84 = scmp.eq.s32.totalorder %s20, 1
      %p85 = por %p83, %p84
      %p87 = scmp.ne.s32.totalorder %s72, %s86
      %p88 = scmp.eq.s32.totalorder %s20, 0
      %p89 = por %p87, %p88
      %s91 = sadd.s32 %s90, 1
      %p94 = scmp.eq.s32.totalorder %s14, 1
      %p95 = scmp.ne.s32.totalorder %s90, %s92
      %p96 = scmp.eq.s32.totalorder %s14, 0
      %p97 = por %p95, %p96
      %p98 = scmp.ne.s32.totalorder %s90, %s92
      %p99 = scmp.eq.s32.totalorder %s19, 1
      %p100 = por %p98, %p99
      %p101 = scmp.ne.s32.totalorder %s92, %s93
      %p102 = scmp.eq.s32.totalorder %s19, 0
      %p103 = por %p101, %p102
      %p104 = scmp.ne.s32.totalorder %s92, %s93
      %p105 = scmp.eq.s32.totalorder %s20, 1
      %p106 = por %p104, %p105
      %p108 = scmp.ne.s32.totalorder %s93, %s107
      %p109 = scmp.eq.s32.totalorder %s20, 0
      %p110 = por %p108, %p109
      %s111 = ssub.s32 %s14, %s21
      %p112 = scmp.eq.s32.totalorder %s111, 0
      %s114 = sadd.s32 %s113, 1
      %s115 = scalar_select %p112, %s113, %s114
      %p118 = pneg %p112
      %p119 = scmp.eq.s32.totalorder %s14, 1
      %p120 = por %p118, %p119
      %p121 = scmp.ne.s32.totalorder %s113, %s116
      %p122 = scmp.eq.s32.totalorder %s14, 0
      %p123 = por %p121, %p122
      %p124 = scmp.ne.s32.totalorder %s113, %s116
      %p125 = scmp.eq.s32.totalorder %s19, 1
      %p126 = por %p124, %p125
      %p127 = scmp.ne.s32.totalorder %s116, %s117
      %p128 = scmp.eq.s32.totalorder %s19, 0
      %p129 = por %p127, %p128
      %p130 = scmp.ne.s32.totalorder %s116, %s117
      %p131 = scmp.eq.s32.totalorder %s20, 1
      %p132 = por %p130, %p131
      %p134 = scmp.ne.s32.totalorder %s117, %s133
      %p135 = scmp.eq.s32.totalorder %s20, 0
      %p136 = por %p134, %p135
      %p137 = scmp.le.s32.totalorder 1, %s14
      %p138 = scmp.lt.s32.totalorder %s14, 3
      %p139 = pnand %p137, %p138
      %p140 = pneg %p139
      // Predicated region
      $region9: #{tpu_custom_call.1} parent=5 // pred_check
        _
      $region10: #{tpu_custom_call.1} parent=5 // pred_check_branch
        %142 = sbr.rel (%p139) target = $region12
      $region11: #{tpu_custom_call.1} parent=5 // pred_region
        %s143 = ssub.s32 %s14, 1
        // Predicated region
        $region13: #{tpu_custom_call.1} parent=11 // pred_check
          %p144 = pneg %p61
        $region14: #{tpu_custom_call.1} parent=11 // pred_check_branch
          %146 = sbr.rel (%p144) target = $region16
        $region15: #{tpu_custom_call.1} parent=11 // pred_region
          %s148 = ssub.s32 512, 512
          %149 = vsyncadd [#allocation5], %s148
          %s150 = sshll.u32 [#allocation4], 4
          %s151 = int_to_ptr.vmem [resolvable:$true] %s150
          %156 = dma.hbm_to_vmem [thread:$0]  %s1, 512, %s151, [#allocation5], 64, 64, 4
        $region16: #{tpu_custom_call.1} parent=11 // pred_fallthru
          _
        // Predicated region
        $region17: #{tpu_custom_call.1} parent=11 // pred_check
          %p157 = pneg %p82
        $region18: #{tpu_custom_call.1} parent=11 // pred_check_branch
          %159 = sbr.rel (%p157) target = $region20
        $region19: #{tpu_custom_call.1} parent=11 // pred_region
          _
        $region20: #{tpu_custom_call.1} parent=11 // pred_fallthru
          _
        // Predicated region
        $region21: #{tpu_custom_call.1} parent=11 // pred_check
          %p160 = pneg %p103
        $region22: #{tpu_custom_call.1} parent=11 // pred_check_branch
          %162 = sbr.rel (%p160) target = $region24
        $region23: #{tpu_custom_call.1} parent=11 // pred_region
          %s164 = ssub.s32 1024, 1024
          %165 = vsyncadd [#allocation5], %s164
          %s166 = sshll.u32 [#allocation6], 4
          %s167 = int_to_ptr.vmem [resolvable:$true] %s166
          %172 = dma.hbm_to_vmem [thread:$0]  %s3, 1024, %s167, [#allocation5], 128, 128, 8
        $region24: #{tpu_custom_call.1} parent=11 // pred_fallthru
          _
      $region12: #{tpu_custom_call.1} parent=5 // pred_fallthru
        _
      %p173 = scmp.lt.s32.totalorder %s14, 2
      // Predicated region
      $region25: #{tpu_custom_call.1} parent=5 // pred_check
        %p174 = pneg %p173
      $region26: #{tpu_custom_call.1} parent=5 // pred_check_branch
        %176 = sbr.rel (%p174) target = $region28
      $region27: #{tpu_custom_call.1} parent=5 // pred_region
        // Predicated region
        $region29: #{tpu_custom_call.1} parent=27 // pred_check
          %p177 = pneg %p34
        $region30: #{tpu_custom_call.1} parent=27 // pred_check_branch
          %179 = sbr.rel (%p177) target = $region32
        $region31: #{tpu_custom_call.1} parent=27 // pred_region
          %s180 = sand.u32 %s24, 1
          %s181 = scalar_lea.sflag [#allocation3], %s180
          %s182 = sand.u32 %s24, 1
          %s183 = smul.addr %s182, 64
          %s184 = scalar_lea.vmem [#allocation2], %s183
          %s185 = smul.u32 2, %s14
          %s187 = ssub.s32 1024, 1024
          %188 = vsyncadd %s181, %s187
          %s189 = smul.addr %s185, 8
          %s190 = smul.addr %s189, 64
          %s191 = scalar_lea.hbm %s0, %s190
          %s192 = sshll.u32 %s184, 4
          %s193 = int_to_ptr.vmem [resolvable:$true] %s192
          %198 = dma.hbm_to_vmem [thread:$0]  %s191, 1024, %s193, %s181, 64, 64, 4
        $region32: #{tpu_custom_call.1} parent=27 // pred_fallthru
          _
      $region28: #{tpu_custom_call.1} parent=5 // pred_fallthru
        _
      %p199 = scmp.le.s32.totalorder 1, %s14
      %p200 = scmp.lt.s32.totalorder %s14, 3
      %p201 = pnand %p199, %p200
      %p202 = pneg %p201
      // Predicated region
      $region33: #{tpu_custom_call.1} parent=5 // pred_check
        _
      $region34: #{tpu_custom_call.1} parent=5 // pred_check_branch
        %204 = sbr.rel (%p201) target = $region36
      $region35: #{tpu_custom_call.1} parent=5 // pred_region
        %s205 = ssub.s32 %s14, 1
        %s206 = sand.u32 %s27, 1
        %s207 = scalar_lea.sflag [#allocation3], %s206
        %s208 = sand.u32 %s27, 1
        %s209 = smul.addr %s208, 64
        %s210 = scalar_lea.vmem [#allocation2], %s209
        // Predicated region
        $region37: #{tpu_custom_call.1} parent=35 // pred_check
          %p211 = pneg %p40
        $region38: #{tpu_custom_call.1} parent=35 // pred_check_branch
          %213 = sbr.rel (%p211) target = $region40
        $region39: #{tpu_custom_call.1} parent=35 // pred_region
          %214 = dma.done %s207, 1024
        $region40: #{tpu_custom_call.1} parent=35 // pred_fallthru
          _
        // Predicated region
        $region41: #{tpu_custom_call.1} parent=35 // pred_check
          %p215 = pneg %p61
        $region42: #{tpu_custom_call.1} parent=35 // pred_check_branch
          %217 = sbr.rel (%p215) target = $region44
        $region43: #{tpu_custom_call.1} parent=35 // pred_region
          %218 = dma.done [#allocation5], 512
        $region44: #{tpu_custom_call.1} parent=35 // pred_fallthru
          _
        // Predicated region
        $region45: #{tpu_custom_call.1} parent=35 // pred_check
          %p219 = pneg %p103
        $region46: #{tpu_custom_call.1} parent=35 // pred_check_branch
          %221 = sbr.rel (%p219) target = $region48
        $region47: #{tpu_custom_call.1} parent=35 // pred_region
          %222 = dma.done [#allocation5], 1024
        $region48: #{tpu_custom_call.1} parent=35 // pred_fallthru
          _
        %s223 = sand.u32 %s27, 1
        %s224 = scalar_lea.sflag [#allocation3], %s223
        %s225 = sand.u32 %s27, 1
        %s226 = smul.addr %s225, 64
        %s227 = scalar_lea.vmem [#allocation2], %s226
        %p228 = pneg %p40
        %p229 = pneg %p37
        %p230 = pneg %p61
        %p231 = pneg %p58
        %p232 = pneg %p82
        %p233 = pneg %p79
        %p234 = pneg %p103
        %p235 = pneg %p100
        %p236 = pneg %p129
        %p237 = pneg %p126
        %s238 = smul.u32 2, %s19
        %p239 = scmp.lt.s32.totalorder %s238, 3
        %s240 = scalar_select %p239, %s238, 3
        %s241 = smul.addr %s240, 9
        %s242 = smul.addr %s241, 8
        %s243 = scalar_lea.vmem %s4, %s242
        %s244 = smul.u32 2, %s19
        %s245 = smul.u32 2, %s19
        %p246 = scmp.lt.s32.totalorder %s245, 3
        %s247 = scalar_select %p246, %s245, 3
        %s248 = smul.addr %s247, 9
        %s249 = smul.addr %s248, 8
        %s250 = scalar_lea.vmem %s4, %s249
        %s251 = smul.u32 2, %s19
        %v253 = vld [vmem:[%s210] sm:$0xf]
        %v254 = vld [vmem:[%s210 + $0x4] sm:$0xf]
        %v255 = vld [vmem:[%s210 + $0x8] sm:$0xf]
        %v256 = vld [vmem:[%s210 + $0xc] sm:$0xf]
        %v257 = vld [vmem:[%s210 + $0x10] sm:$0xf]
        %v258 = vld [vmem:[%s210 + $0x14] sm:$0xf]
        %v259 = vld [vmem:[%s210 + $0x18] sm:$0xf]
        %v260 = vld [vmem:[%s210 + $0x1c] sm:$0xf]
        %v261 = vld [vmem:[%s210 + $0x20] sm:$0xf]
        %v262 = vld [vmem:[%s210 + $0x24] sm:$0xf]
        %v263 = vld [vmem:[%s210 + $0x28] sm:$0xf]
        %v264 = vld [vmem:[%s210 + $0x2c] sm:$0xf]
        %v265 = vld [vmem:[%s210 + $0x30] sm:$0xf]
        %v266 = vld [vmem:[%s210 + $0x34] sm:$0xf]
        %v267 = vld [vmem:[%s210 + $0x38] sm:$0xf]
        %v268 = vld [vmem:[%s210 + $0x3c] sm:$0xf]
        %v269 = vld [vmem:[#allocation4] sm:$0xf]
        %v270 = vld [vmem:[#allocation4 + $0x4] sm:$0xf]
        %v271 = vld [vmem:[#allocation4 + $0x8] sm:$0xf]
        %v272 = vld [vmem:[#allocation4 + $0xc] sm:$0xf]
        %v273 = vld [vmem:[#allocation4 + $0x10] sm:$0xf]
        %v274 = vld [vmem:[#allocation4 + $0x14] sm:$0xf]
        %v275 = vld [vmem:[#allocation4 + $0x18] sm:$0xf]
        %v276 = vld [vmem:[#allocation4 + $0x1c] sm:$0xf]
        %v293 = vunpack.c.l.b16 %v253
        %v294 = vunpack.c.l.b16 %v254
        %v295 = vunpack.c.l.b16 %v255
        %v296 = vunpack.c.l.b16 %v256
        %v297 = vunpack.c.l.b16 %v257
        %v298 = vunpack.c.l.b16 %v258
        %v299 = vunpack.c.l.b16 %v259
        %v300 = vunpack.c.l.b16 %v260
        %v301 = vunpack.c.l.b16 %v261
        %v302 = vunpack.c.l.b16 %v262
        %v303 = vunpack.c.l.b16 %v263
        %v304 = vunpack.c.l.b16 %v264
        %v305 = vunpack.c.l.b16 %v265
        %v306 = vunpack.c.l.b16 %v266
        %v307 = vunpack.c.l.b16 %v267
        %v308 = vunpack.c.l.b16 %v268
        %v309 = vpack.c.b16 %v294, %v293
        %v310 = vpack.c.b16 %v296, %v295
        %v311 = vpack.c.b16 %v298, %v297
        %v312 = vpack.c.b16 %v300, %v299
        %v313 = vpack.c.b16 %v302, %v301
        %v314 = vpack.c.b16 %v304, %v303
        %v315 = vpack.c.b16 %v306, %v305
        %v316 = vpack.c.b16 %v308, %v307
        %v325 = vunpack.c.l.b16 %v269
        %v326 = vunpack.c.l.b16 %v270
        %v327 = vunpack.c.l.b16 %v271
        %v328 = vunpack.c.l.b16 %v272
        %v329 = vunpack.c.l.b16 %v273
        %v330 = vunpack.c.l.b16 %v274
        %v331 = vunpack.c.l.b16 %v275
        %v332 = vunpack.c.l.b16 %v276
        %v333 = vpack.c.b16 %v326, %v325
        %v334 = vpack.c.b16 %v328, %v327
        %v335 = vpack.c.b16 %v330, %v329
        %v336 = vpack.c.b16 %v332, %v331
        %vm341 = vcmask 523264
        %v343 = vsel %vm341, %v309, 0
        %v346 = vsel %vm341, %v310, 0
        %v349 = vsel %vm341, %v311, 0
        %v352 = vsel %vm341, %v312, 0
        %v355 = vsel %vm341, %v313, 0
        %v358 = vsel %vm341, %v314, 0
        %v361 = vsel %vm341, %v315, 0
        %v364 = vsel %vm341, %v316, 0
        %366 = vmatprep.subr.bf16.mxu0 0
        %367 = vmatpush1.bf16.msra.mxu0 0
        %368 = vmatprep.subr.bf16.mxu0 0
        %369 = vmatpush1.bf16.msra.mxu0 0
        %370 = vmatprep.subr.bf16.mxu0 0
        %371 = vmatpush1.bf16.msra.mxu0 0
        %372 = vmatprep.subr.bf16.mxu0 0
        %373 = vmatpush1.bf16.msra.mxu0 0
        %374 = vmatprep.subr.bf16.mxu0 0
        %375 = vmatpush1.bf16.msra.mxu0 %v336
        %376 = vmatprep.subr.bf16.mxu0 0
        %377 = vmatpush1.bf16.msra.mxu0 %v335
        %378 = vmatprep.subr.bf16.mxu0 0
        %379 = vmatpush1.bf16.msra.mxu0 %v334
        %380 = vmatprep.subr.bf16.mxu0 0
        %381 = vmatpush1.bf16.msra.mxu0 %v333
        %382 = vmatprep.subr.bf16.mxu0 0
        %383 = vmatpush2.bf16.msra.mxu0 0
        %384 = vmatprep.subr.bf16.mxu0 0
        %385 = vmatpush2.bf16.msra.mxu0 0
        %386 = vmatprep.subr.bf16.mxu0 0
        %387 = vmatpush2.bf16.msra.mxu0 0
        %388 = vmatprep.subr.bf16.mxu0 0
        %389 = vmatpush2.bf16.msra.mxu0 0
        %390 = vmatprep.subr.bf16.mxu0 0
        %391 = vmatpush2.bf16.msra.mxu0 0
        %392 = vmatprep.subr.bf16.mxu0 0
        %393 = vmatpush2.bf16.msra.mxu0 0
        %394 = vmatprep.subr.bf16.mxu0 0
        %395 = vmatpush2.bf16.msra.mxu0 0
        %396 = vmatprep.subr.bf16.mxu0 0
        %397 = vmatpush2.bf16.msra.mxu0 0
        %398 = vmatprep.mubr.bf16.mxu0 0
        %399 = vmatmul.mubr.bf16.gmra.mxu0 %v343
        %v400 = vpop.f32.mrf.mxu0
        %v401 = vadd.f32 0.0, %v400
        %v402 = vpop.f32.mrf.mxu0
        %v403 = vpop.f32.mrf.mxu0
        %v404 = vadd.f32 0.0, %v403
        %v405 = vpop.f32.mrf.mxu0
        %406 = vmatprep.mubr.bf16.mxu0 0
        %407 = vmatmul.mubr.bf16.gmra.mxu0 %v346
        %v408 = vpop.f32.mrf.mxu0
        %v409 = vadd.f32 0.0, %v408
        %v410 = vpop.f32.mrf.mxu0
        %v411 = vpop.f32.mrf.mxu0
        %v412 = vadd.f32 0.0, %v411
        %v413 = vpop.f32.mrf.mxu0
        %414 = vmatprep.mubr.bf16.mxu0 0
        %415 = vmatmul.mubr.bf16.gmra.mxu0 %v349
        %v416 = vpop.f32.mrf.mxu0
        %v417 = vadd.f32 0.0, %v416
        %v418 = vpop.f32.mrf.mxu0
        %v419 = vpop.f32.mrf.mxu0
        %v420 = vadd.f32 0.0, %v419
        %v421 = vpop.f32.mrf.mxu0
        %422 = vmatprep.mubr.bf16.mxu0 0
        %423 = vmatmul.mubr.bf16.gmra.mxu0 %v352
        %v424 = vpop.f32.mrf.mxu0
        %v425 = vadd.f32 0.0, %v424
        %v426 = vpop.f32.mrf.mxu0
        %v427 = vpop.f32.mrf.mxu0
        %v428 = vadd.f32 0.0, %v427
        %v429 = vpop.f32.mrf.mxu0
        %430 = vmatprep.mubr.bf16.mxu0 0
        %431 = vmatmul.mubr.bf16.gmra.mxu0 %v355
        %v432 = vpop.f32.mrf.mxu0
        %v433 = vadd.f32 0.0, %v432
        %v434 = vpop.f32.mrf.mxu0
        %v435 = vpop.f32.mrf.mxu0
        %v436 = vadd.f32 0.0, %v435
        %v437 = vpop.f32.mrf.mxu0
        %438 = vmatprep.mubr.bf16.mxu0 0
        %439 = vmatmul.mubr.bf16.gmra.mxu0 %v358
        %v440 = vpop.f32.mrf.mxu0
        %v441 = vadd.f32 0.0, %v440
        %v442 = vpop.f32.mrf.mxu0
        %v443 = vpop.f32.mrf.mxu0
        %v444 = vadd.f32 0.0, %v443
        %v445 = vpop.f32.mrf.mxu0
        %446 = vmatprep.mubr.bf16.mxu0 0
        %447 = vmatmul.mubr.bf16.gmra.mxu0 %v361
        %v448 = vpop.f32.mrf.mxu0
        %v449 = vadd.f32 0.0, %v448
        %v450 = vpop.f32.mrf.mxu0
        %v451 = vpop.f32.mrf.mxu0
        %v452 = vadd.f32 0.0, %v451
        %v453 = vpop.f32.mrf.mxu0
        %454 = vmatprep.mubr.bf16.mxu0 0
        %455 = vmatmul.mubr.bf16.gmra.mxu0 %v364
        %v456 = vpop.f32.mrf.mxu0
        %v457 = vadd.f32 0.0, %v456
        %v458 = vpop.f32.mrf.mxu0
        %v459 = vpop.f32.mrf.mxu0
        %v460 = vadd.f32 0.0, %v459
        %v461 = vpop.f32.mrf.mxu0
        %462 = vdwg.mxu0
        %v463 = vld [vmem:[#allocation6] sm:$0xff]
        %v464 = vld [vmem:[#allocation6 + $0x8] sm:$0xff]
        %v465 = vld [vmem:[#allocation6 + $0x10] sm:$0xff]
        %v466 = vld [vmem:[#allocation6 + $0x18] sm:$0xff]
        %v467 = vld [vmem:[#allocation6 + $0x20] sm:$0xff]
        %v468 = vld [vmem:[#allocation6 + $0x28] sm:$0xff]
        %v469 = vld [vmem:[#allocation6 + $0x30] sm:$0xff]
        %v470 = vld [vmem:[#allocation6 + $0x38] sm:$0xff]
        %v471 = vadd.f32 %v401, %v463
        %v472 = vadd.f32 %v404, %v464
        %v473 = vadd.f32 %v409, %v465
        %v474 = vadd.f32 %v412, %v466
        %v475 = vadd.f32 %v417, %v467
        %v476 = vadd.f32 %v420, %v468
        %v477 = vadd.f32 %v425, %v469
        %v478 = vadd.f32 %v428, %v470
        %v479 = vadd.f32 %v433, %v463
        %v480 = vadd.f32 %v436, %v464
        %v481 = vadd.f32 %v441, %v465
        %v482 = vadd.f32 %v444, %v466
        %v483 = vadd.f32 %v449, %v467
        %v484 = vadd.f32 %v452, %v468
        %v485 = vadd.f32 %v457, %v469
        %v486 = vadd.f32 %v460, %v470
        %487 = vst [vmem:[%s250 + $0x1] sm:$0xff] %v471
        %488 = vst [vmem:[%s250 + $0x9] sm:$0xff] %v472
        %489 = vst [vmem:[%s250 + $0x11] sm:$0xff] %v473
        %490 = vst [vmem:[%s250 + $0x19] sm:$0xff] %v474
        %491 = vst [vmem:[%s250 + $0x21] sm:$0xff] %v475
        %492 = vst [vmem:[%s250 + $0x29] sm:$0xff] %v476
        %493 = vst [vmem:[%s250 + $0x31] sm:$0xff] %v477
        %494 = vst [vmem:[%s250 + $0x39] sm:$0xff] %v478
        %495 = vst [vmem:[%s250 + $0x49] sm:$0xff] %v479
        %496 = vst [vmem:[%s250 + $0x51] sm:$0xff] %v480
        %497 = vst [vmem:[%s250 + $0x59] sm:$0xff] %v481
        %498 = vst [vmem:[%s250 + $0x61] sm:$0xff] %v482
        %499 = vst [vmem:[%s250 + $0x69] sm:$0xff] %v483
        %500 = vst [vmem:[%s250 + $0x71] sm:$0xff] %v484
        %501 = vst [vmem:[%s250 + $0x79] sm:$0xff] %v485
        %502 = vst [vmem:[%s250 + $0x81] sm:$0xff] %v486
        %v503 = vld [vmem:[%s2] sm:$0x1]
        %504 = vst [vmem:[%s250] sm:$0x1] %v503
        %505 = vst [vmem:[%s250 + $0x48] sm:$0x1] %v503
        %s506 = smul.u32 2, %s19
        %p507 = scmp.lt.s32.totalorder %s506, 3
        %s508 = scalar_select %p507, %s506, 3
        %s509 = smul.addr %s508, 9
        %s510 = smul.addr %s509, 8
        %s511 = scalar_lea.vmem %s4, %s510
        // Predicated region
        $region49: #{tpu_custom_call.1} parent=35 // pred_check
          %p512 = pneg %p126
        $region50: #{tpu_custom_call.1} parent=35 // pred_check_branch
          %514 = sbr.rel (%p512) target = $region52
        $region51: #{tpu_custom_call.1} parent=35 // pred_region
          %s515 = smul.u32 2, %s19
        $region52: #{tpu_custom_call.1} parent=35 // pred_fallthru
          _
      $region36: #{tpu_custom_call.1} parent=5 // pred_fallthru
        _
      %p516 = scmp.le.s32.totalorder 2, %s14
      // Predicated region
      $region53: #{tpu_custom_call.1} parent=5 // pred_check
        %p517 = pneg %p516
      $region54: #{tpu_custom_call.1} parent=5 // pred_check_branch
        %519 = sbr.rel (%p517) target = $region56
      $region55: #{tpu_custom_call.1} parent=5 // pred_region
        %s520 = ssub.s32 %s14, 2
        // Predicated region
        $region57: #{tpu_custom_call.1} parent=55 // pred_check
          %p521 = pneg %p132
        $region58: #{tpu_custom_call.1} parent=55 // pred_check_branch
          %523 = sbr.rel (%p521) target = $region60
        $region59: #{tpu_custom_call.1} parent=55 // pred_region
          %s524 = smul.u32 2, %s20
          %p525 = scmp.lt.s32.totalorder %s524, 3
          %s526 = scalar_select %p525, %s524, 3
          %s527 = smul.addr %s526, 9
          %s528 = smul.addr %s527, 8
          %s529 = scalar_lea.vmem %s4, %s528
        $region60: #{tpu_custom_call.1} parent=55 // pred_fallthru
          _
      $region56: #{tpu_custom_call.1} parent=5 // pred_fallthru
        _
    $region6: #{tpu_custom_call.1} parent=1 // loop_footer
      %s18 = sadd.s32 1, %s14
    $region7: #{tpu_custom_call.1} parent=1 // loop_footer_branch
      %13 = sbr.rel target = $region3
    $region8: #{tpu_custom_call.1} parent=1 // loop_exit
      _
    %530 = vsyncpa [#allocation3], 1
    %s531 = scalar_lea.sflag [#allocation3], 1
    %532 = vsyncpa %s531, 1
    %533 = vsyncpa [#allocation5], 1

</llo_original>
